<compile_context>
chip_gen: v5e
topology: v5e:2x2
jax: 0.10.0
libtpu: 0.0.40
codegen_flags: <defaults>
</compile_context>

<pallas_src>
import functools

import jax
import jax.numpy as jnp
from jax import lax
from jax.experimental import pallas as pl
from jax.experimental.pallas import tpu as pltpu


# ---------------------------------------------------------------------------
# Kernel 1: "generate" = depthwise conv (groups=inp, out=inp*k^2) + BN + ReLU.
#   in : patches (b, c, kk, h*w)  im2col slab (stride already applied in glue)
#         wg     (c, kk, kk)      BN-folded per-channel weight block
#         bg     (c, kk, 1)       BN-folded bias
#   out: gen     (b, c, kk, h*w)  lane-dense (h*w = 256 lanes at test size)
# One MXU matmul per (batch, channel) grid step.
# ---------------------------------------------------------------------------
def _generate_kernel(p_ref, w_ref, b_ref, out_ref):
    acc = jnp.dot(w_ref[...], p_ref[...], preferred_element_type=jnp.float32)
    out_ref[...] = jnp.maximum(acc + b_ref[...], 0.0)


def generate_conv(patches, wg, bg, *, c, kk, hw):
    b = patches.shape[0]
    return pl.pallas_call(
        _generate_kernel,
        out_shape=jax.ShapeDtypeStruct((b, c, kk, hw), jnp.float32),
        grid=(b, c),
        in_specs=[
            pl.BlockSpec((pl.Squeezed(), pl.Squeezed(), kk, hw),
                         lambda bi, ci: (bi, ci, 0, 0)),
            pl.BlockSpec((pl.Squeezed(), kk, kk), lambda bi, ci: (ci, 0, 0)),
            pl.BlockSpec((pl.Squeezed(), kk, 1), lambda bi, ci: (ci, 0, 0)),
        ],
        out_specs=pl.BlockSpec((pl.Squeezed(), pl.Squeezed(), kk, hw),
                               lambda bi, ci: (bi, ci, 0, 0)),
        compiler_params=pltpu.CompilerParams(
            dimension_semantics=("parallel", "parallel"),
            vmem_limit_bytes=48 * 1024 * 1024),
    )(patches, wg, bg)


# ---------------------------------------------------------------------------
# Kernel 2: coordinate-attention branch.
#   channel mean/max -> 7x7 conv (conmaxmin) -> adaptive avg pools ->
#   conv1+bn1+h_swish -> conv_h / conv_w -> sigmoid
#   in : gf (b, c, hk, wk)  (rearranged generate_feature)
#   out: a_h (b, c, hk), a_w (b, c, wk)
# The 1x1 convs are per-column linear maps, so the torch.cat / torch.split
# pair is equivalent to processing the H-half and W-half separately (exact,
# since BN1 is a per-channel affine in eval mode).
# ---------------------------------------------------------------------------
def _attention_kernel(gf_ref, wmix_ref, bmix_ref, w1_ref, b1_ref,
                      wh_ref, bh_ref, ww_ref, bw_ref,
                      ah_ref, aw_ref, pm_ref, px_ref, *, hk, wk):
    gf = gf_ref[...]                                   # (c, hk, wk)

    # torch.mean / torch.max over channel dim
    xc_mean = jnp.mean(gf, axis=0)                     # (hk, wk)
    xc_max = jnp.max(gf, axis=0)                       # (hk, wk)

    # 7x7 conv (2 -> 1 channel, padding 3) via zero-padded scratch + 98 taps
    pm_ref[...] = jnp.zeros_like(pm_ref)
    px_ref[...] = jnp.zeros_like(px_ref)
    pm_ref[3:3 + hk, 3:3 + wk] = xc_mean
    px_ref[3:3 + hk, 3:3 + wk] = xc_max
    xc = jnp.full((hk, wk), bmix_ref[0], dtype=jnp.float32)
    for ch, src_ref in enumerate((pm_ref, px_ref)):
        for u in range(7):
            for vv in range(7):
                xc = xc + wmix_ref[ch * 49 + u * 7 + vv] * src_ref[u:u + hk, vv:vv + wk]

    # adaptive average pools
    xc_h = jnp.mean(xc, axis=1)                        # (hk,)  pool over width
    xc_w = jnp.mean(xc, axis=0)                        # (wk,)  pool over height
    x_h = jnp.mean(gf, axis=2) * xc_h[None, :]         # (c, hk)
    x_w = jnp.mean(gf, axis=1) * xc_w[None, :]         # (c, wk)

    # conv1 + bn1 (eval, folded) + h_swish  (MXU dots)
    def mlp(feat):
        y = jnp.dot(w1_ref[...], feat,
                    preferred_element_type=jnp.float32) + b1_ref[...]
        return y * jnp.clip(y + 3.0, 0.0, 6.0) * (1.0 / 6.0)   # h_swish

    yh = mlp(x_h)                                      # (mip, hk)
    yw = mlp(x_w)                                      # (mip, wk)

    ah_ref[...] = jax.nn.sigmoid(
        jnp.dot(wh_ref[...], yh, preferred_element_type=jnp.float32) + bh_ref[...])
    aw_ref[...] = jax.nn.sigmoid(
        jnp.dot(ww_ref[...], yw, preferred_element_type=jnp.float32) + bw_ref[...])


def attention(gf, wmix_flat, bmix, w1f, b1f, wh, bh, ww, bw, *, c, mip, hk, wk):
    b = gf.shape[0]
    kernel = functools.partial(_attention_kernel, hk=hk, wk=wk)
    return pl.pallas_call(
        kernel,
        out_shape=(jax.ShapeDtypeStruct((b, c, hk), jnp.float32),
                   jax.ShapeDtypeStruct((b, c, wk), jnp.float32)),
        grid=(b,),
        in_specs=[
            pl.BlockSpec((pl.Squeezed(), c, hk, wk), lambda bi: (bi, 0, 0, 0)),
            pl.BlockSpec(memory_space=pltpu.MemorySpace.SMEM),
            pl.BlockSpec(memory_space=pltpu.MemorySpace.SMEM),
            pl.BlockSpec((mip, c), lambda bi: (0, 0)),
            pl.BlockSpec((mip, 1), lambda bi: (0, 0)),
            pl.BlockSpec((c, mip), lambda bi: (0, 0)),
            pl.BlockSpec((c, 1), lambda bi: (0, 0)),
            pl.BlockSpec((c, mip), lambda bi: (0, 0)),
            pl.BlockSpec((c, 1), lambda bi: (0, 0)),
        ],
        out_specs=(
            pl.BlockSpec((pl.Squeezed(), c, hk), lambda bi: (bi, 0, 0)),
            pl.BlockSpec((pl.Squeezed(), c, wk), lambda bi: (bi, 0, 0)),
        ),
        scratch_shapes=[pltpu.VMEM((hk + 6, wk + 6), jnp.float32),
                        pltpu.VMEM((hk + 6, wk + 6), jnp.float32)],
        compiler_params=pltpu.CompilerParams(
            dimension_semantics=("parallel",),
            vmem_limit_bytes=48 * 1024 * 1024),
    )(gf, wmix_flat, bmix, w1f, b1f, wh, bh, ww, bw)


# ---------------------------------------------------------------------------
# Kernel 3 (fused): attention-apply + Conv2d(inp, oup, k, stride=k).
#   in : gen_q (b, c*kk, h*w)  generate feature in patch layout (lane-dense)
#        aq    (b, c*kk, h)    per-(channel, patch-pos) row factors  a_h
#        bq    (b, c*kk, w)    per-(channel, patch-pos) col factors  a_w
#        S     (h, h*w)        0/1 expansion: S[hi, p] = (p // w == hi)
#        T     (w, h*w)        0/1 expansion: T[wi, p] = (p %  w == wi)
#        wf    (oup, c*kk), bf (oup, 1)
#   out: (b, oup, h*w)
# mod[q, p] = gen[q, p] * (aq @ S)[q, p] * (bq @ T)[q, p]; out = wf @ mod + bf.
# Everything is MXU dots + full-lane elementwise ops; the only stores are the
# lane-dense (oup, h*w) output slab.
# ---------------------------------------------------------------------------
def _final_kernel(gen_ref, aq_ref, bq_ref, s_ref, t_ref, wf_ref, bf_ref, out_ref):
    a_flat = jnp.dot(aq_ref[...], s_ref[...], preferred_element_type=jnp.float32)
    b_flat = jnp.dot(bq_ref[...], t_ref[...], preferred_element_type=jnp.float32)
    mod = gen_ref[...] * a_flat * b_flat
    out_ref[...] = jnp.dot(wf_ref[...], mod,
                           preferred_element_type=jnp.float32) + bf_ref[...]


def final_conv(gen_q, aq, bq, S, T, wf_mat, bf, *, q, oup, hw, h, w):
    b = gen_q.shape[0]
    return pl.pallas_call(
        _final_kernel,
        out_shape=jax.ShapeDtypeStruct((b, oup, hw), jnp.float32),
        grid=(b,),
        in_specs=[
            pl.BlockSpec((pl.Squeezed(), q, hw), lambda bi: (bi, 0, 0)),
            pl.BlockSpec((pl.Squeezed(), q, h), lambda bi: (bi, 0, 0)),
            pl.BlockSpec((pl.Squeezed(), q, w), lambda bi: (bi, 0, 0)),
            pl.BlockSpec((h, hw), lambda bi: (0, 0)),
            pl.BlockSpec((w, hw), lambda bi: (0, 0)),
            pl.BlockSpec((oup, q), lambda bi: (0, 0)),
            pl.BlockSpec((oup, 1), lambda bi: (0, 0)),
        ],
        out_specs=pl.BlockSpec((pl.Squeezed(), oup, hw), lambda bi: (bi, 0, 0)),
        compiler_params=pltpu.CompilerParams(
            dimension_semantics=("parallel",),
            vmem_limit_bytes=48 * 1024 * 1024),
    )(gen_q, aq, bq, S, T, wf_mat, bf)


# ---------------------------------------------------------------------------
# Full RFCAConv forward (Pallas path).  Glue (padding / im2col / reshape /
# transpose / BN folding) is layout plumbing in plain JAX; all conv, pooling,
# reduction and attention math runs inside the three kernels above.
# ---------------------------------------------------------------------------
def rfca_forward(x, p, *, k, stride, oup):
    b, c, H, W = x.shape
    kk = k * k
    mip = p['w1'].shape[0]
    eps = 1e-5

    # -- generate: BN(eval) folded into the depthwise conv --------------------
    s_gen = p['gn_gamma'] / jnp.sqrt(p['gn_var'] + eps)
    w_gen_f = p['w_gen'][:, 0] * s_gen[:, None, None]            # (c*kk, k, k)
    b_gen_f = p['gn_beta'] - p['gn_mean'] * s_gen                # (c*kk,)
    wg = w_gen_f.reshape(c, kk, kk)                              # per-channel block
    bg = b_gen_f.reshape(c, kk, 1)

    pad = k // 2
    xpad = jnp.pad(x, ((0, 0), (0, 0), (pad, pad), (pad, pad)))
    h = (H + 2 * pad - k) // stride + 1
    w = (W + 2 * pad - k) // stride + 1
    hw = h * w

    # im2col (layout plumbing, stride applied here so no wasted compute):
    # patches[b, ci, di*k+dj, hi*w+wi] = xpad[b, ci, hi*stride+di, wi*stride+dj]
    wins = []
    for di in range(k):
        for dj in range(k):
            win = xpad[:, :, di:di + (h - 1) * stride + 1:stride,
                             dj:dj + (w - 1) * stride + 1:stride]
            wins.append(win.reshape(b, c, 1, hw))
    patches = jnp.concatenate(wins, axis=2)                      # (b, c, kk, h*w)

    gen = generate_conv(patches, wg, bg, c=c, kk=kk, hw=hw)      # (b, c, kk, h*w)

    hk, wk = h * k, w * k
    # rearrange 'b c (n1 n2) h w -> b c (h n1) (w n2)'  (glue)
    gf = gen.reshape(b, c, k, k, h, w).transpose(0, 1, 4, 2, 5, 3).reshape(b, c, hk, wk)

    # -- attention branch (BN1 folded) -----------------------------------------
    s1 = p['bn1_gamma'] / jnp.sqrt(p['bn1_var'] + eps)
    w1f = p['w1'][:, :, 0, 0] * s1[:, None]                      # (mip, c)
    b1f = ((p['b1'] - p['bn1_mean']) * s1 + p['bn1_beta'])[:, None]
    a_h, a_w = attention(gf, p['w_mix'].reshape(-1), p['b_mix'],
                         w1f, b1f,
                         p['wh'][:, :, 0, 0], p['bh'][:, None],
                         p['ww'][:, :, 0, 0], p['bw'][:, None],
                         c=c, mip=mip, hk=hk, wk=wk)

    # tiny per-(channel, patch-position) factors in gen layout (glue, ~KBs):
    #   aq[b, ci*kk + n1*k + n2, hi] = a_h[b, ci, hi*k + n1]
    #   bq[b, ci*kk + n1*k + n2, wi] = a_w[b, ci, wi*k + n2]
    aq = jnp.broadcast_to(
        a_h.reshape(b, c, h, k).transpose(0, 1, 3, 2)[:, :, :, None, :],
        (b, c, k, k, h)).reshape(b, c * kk, h)
    bq = jnp.broadcast_to(
        a_w.reshape(b, c, w, k).transpose(0, 1, 3, 2)[:, :, None, :, :],
        (b, c, k, k, w)).reshape(b, c * kk, w)

    # 0/1 expansion operators used by the fused kernel to broadcast the row /
    # column factors onto the flat h*w lane axis via the MXU.
    pidx = jnp.arange(hw)
    S = (pidx[None, :] // w == jnp.arange(h)[:, None]).astype(jnp.float32)   # (h, h*w)
    T = (pidx[None, :] % w == jnp.arange(w)[:, None]).astype(jnp.float32)    # (w, h*w)

    wf_mat = p['wf'].reshape(oup, c * kk)
    bf = p['bf'][:, None]

    out_flat = final_conv(gen.reshape(b, c * kk, hw), aq, bq, S, T, wf_mat, bf,
                          q=c * kk, oup=oup, hw=hw, h=h, w=w)
    return out_flat.reshape(b, oup, h, w)


# ---------------------------------------------------------------------------
# Pure-JAX (XLA) reference of the PyTorch forward for validation.
# ---------------------------------------------------------------------------
def _conv2d(x, w, bias=None, stride=1, padding=0, groups=1):
    out = lax.conv_general_dilated(
        x, w, window_strides=(stride, stride),
        padding=((padding, padding), (padding, padding)),
        dimension_numbers=('NCHW', 'OIHW', 'NCHW'),
        feature_group_count=groups,
        precision=lax.Precision.HIGHEST)
    if bias is not None:
        out = out + bias[None, :, None, None]
    return out


def _bn_eval(x, gamma, beta, mean, var, eps=1e-5):
    s = gamma / jnp.sqrt(var + eps)
    return (x - mean[None, :, None, None]) * s[None, :, None, None] + beta[None, :, None, None]


def _h_swish(x):
    return x * jnp.clip(x + 3.0, 0.0, 6.0) / 6.0


def reference_forward(x, p, *, k, stride):
    b, c = x.shape[:2]
    gen = _conv2d(x, p['w_gen'], None, stride=stride, padding=k // 2, groups=c)
    gen = jnp.maximum(_bn_eval(gen, p['gn_gamma'], p['gn_beta'], p['gn_mean'], p['gn_var']), 0.0)
    h, w = gen.shape[2:]
    gf = gen.reshape(b, c, k, k, h, w).transpose(0, 1, 4, 2, 5, 3).reshape(b, c, h * k, w * k)
    x_h = jnp.mean(gf, axis=3, keepdims=True)
    x_w = jnp.mean(gf, axis=2, keepdims=True).transpose(0, 1, 3, 2)
    x_c = jnp.concatenate([jnp.mean(gf, axis=1, keepdims=True),
                           jnp.max(gf, axis=1, keepdims=True)], axis=1)
    x_c = _conv2d(x_c, p['w_mix'], p['b_mix'], padding=3)
    x_h = x_h * jnp.mean(x_c, axis=3, keepdims=True)
    x_w = x_w * jnp.mean(x_c, axis=2, keepdims=True).transpose(0, 1, 3, 2)
    y = jnp.concatenate([x_h, x_w], axis=2)
    y = _conv2d(y, p['w1'], p['b1'])
    y = _h_swish(_bn_eval(y, p['bn1_gamma'], p['bn1_beta'], p['bn1_mean'], p['bn1_var']))
    hk, wk = h * k, w * k
    y_h, y_w = y[:, :, :hk, :], y[:, :, hk:, :].transpose(0, 1, 3, 2)
    a_h = jax.nn.sigmoid(_conv2d(y_h, p['wh'], p['bh']))
    a_w = jax.nn.sigmoid(_conv2d(y_w, p['ww'], p['bw']))
    return _conv2d(gf * a_w * a_h, p['wf'], p['bf'], stride=k)


# ---------------------------------------------------------------------------
# Deterministic parameter init (same shapes as the PyTorch module __init__).
# ---------------------------------------------------------------------------
def init_params(key, inp, oup, k, mip):
    kk = k * k
    ks = jax.random.split(key, 20)
    n = lambda kx, shape, s=0.2: s * jax.random.normal(kx, shape, jnp.float32)
    u = lambda kx, shape: jax.random.uniform(kx, shape, jnp.float32, 0.5, 1.5)
    return {
        'w_gen': n(ks[0], (inp * kk, 1, k, k), 0.3),
        'gn_gamma': 1.0 + n(ks[1], (inp * kk,), 0.1),
        'gn_beta': n(ks[2], (inp * kk,), 0.1),
        'gn_mean': n(ks[3], (inp * kk,), 0.1),
        'gn_var': u(ks[4], (inp * kk,)),
        'w_mix': n(ks[5], (1, 2, 7, 7), 0.1),
        'b_mix': n(ks[6], (1,), 0.1),
        'w1': n(ks[7], (mip, inp, 1, 1), 0.3),
        'b1': n(ks[8], (mip,), 0.1),
        'bn1_gamma': 1.0 + n(ks[9], (mip,), 0.1),
        'bn1_beta': n(ks[10], (mip,), 0.1),
        'bn1_mean': n(ks[11], (mip,), 0.1),
        'bn1_var': u(ks[12], (mip,)),
        'wh': n(ks[13], (inp, mip, 1, 1), 0.3),
        'bh': n(ks[14], (inp,), 0.1),
        'ww': n(ks[15], (inp, mip, 1, 1), 0.3),
        'bw': n(ks[16], (inp,), 0.1),
        'wf': n(ks[17], (oup, inp, k, k), 0.2),
        'bf': n(ks[18], (oup,), 0.1),
    }


if __name__ == "__main__":
    B, INP, OUP, K, STRIDE = 2, 4, 8, 3, 1
    H = W = 16
    MIP = max(8, INP // 32)

    key = jax.random.PRNGKey(0)
    kx, kp = jax.random.split(key)
    x = jax.random.normal(kx, (B, INP, H, W), dtype=jnp.float32)
    p = init_params(kp, INP, OUP, K, MIP)

    out = jax.block_until_ready(rfca_forward(x, p, k=K, stride=STRIDE, oup=OUP))
    ref = jax.block_until_ready(reference_forward(x, p, k=K, stride=STRIDE))

    assert out.shape == (B, OUP, H, W), out.shape
    # f32 MXU accumulation normally agrees to ~1e-5; the 2e-2 bound leaves
    # headroom for MXU f32 pass rounding while still catching indexing bugs.
    max_err = float(jnp.max(jnp.abs(out - ref)))
    assert max_err < 2e-2, f"max abs error {max_err}"
    print("KERNEL_OK")
</pallas_src>

<mosaic_0001>
module attributes {stable_mosaic.version = 11 : i64} {
  func.func @_generate_kernel(%arg0: i32, %arg1: i32, %arg2: memref<1x1x9x256xf32, #tpu.memory_space<vmem>>, %arg3: memref<1x9x9xf32, #tpu.memory_space<vmem>>, %arg4: memref<1x9x1xf32, #tpu.memory_space<vmem>>, %arg5: memref<1x1x9x256xf32, #tpu.memory_space<vmem>>) attributes {dimension_semantics = [#tpu.dimension_semantics<parallel>, #tpu.dimension_semantics<parallel>], iteration_bounds = array<i64: 2, 4>, scalar_prefetch = 0 : i64, scratch_operands = 0 : i64, tpu.core_type = #tpu.core_type<tc>, window_params = [{transform_indices = @transform_0, window_bounds = array<i64: 1, 1, 9, 256>}, {transform_indices = @transform_1, window_bounds = array<i64: 1, 9, 9>}, {transform_indices = @transform_2, window_bounds = array<i64: 1, 9, 1>}, {transform_indices = @transform_3, window_bounds = array<i64: 1, 1, 9, 256>}]} {
    %c0 = arith.constant 0 : index
    %c0_0 = arith.constant 0 : index
    %c0_1 = arith.constant 0 : index
    %0 = vector.load %arg3[%c0, %c0_0, %c0_1] : memref<1x9x9xf32, #tpu.memory_space<vmem>>, vector<1x9x9xf32>
    %1 = vector.shape_cast %0 : vector<1x9x9xf32> to vector<9x9xf32>
    %c0_2 = arith.constant 0 : index
    %c0_3 = arith.constant 0 : index
    %c0_4 = arith.constant 0 : index
    %c0_5 = arith.constant 0 : index
    %2 = vector.load %arg2[%c0_2, %c0_3, %c0_4, %c0_5] : memref<1x1x9x256xf32, #tpu.memory_space<vmem>>, vector<1x1x9x256xf32>
    %3 = vector.shape_cast %2 : vector<1x1x9x256xf32> to vector<9x256xf32>
    %cst = arith.constant dense<0.000000e+00> : vector<9x256xf32>
    %4 = tpu.matmul %1, %3, %cst {dimension_numbers = #tpu.dot_dimension_numbers<[1], [0], [0], [1], [0, 0, 1, 1], [], []>} : vector<9x9xf32>, vector<9x256xf32>, vector<9x256xf32> -> vector<9x256xf32>
    %c0_6 = arith.constant 0 : index
    %c0_7 = arith.constant 0 : index
    %c0_8 = arith.constant 0 : index
    %5 = vector.load %arg4[%c0_6, %c0_7, %c0_8] : memref<1x9x1xf32, #tpu.memory_space<vmem>>, vector<1x9x1xf32>
    %6 = vector.shape_cast %5 : vector<1x9x1xf32> to vector<9x1xf32>
    %7 = vector.broadcast %6 : vector<9x1xf32> to vector<9x256xf32>
    %8 = arith.addf %4, %7 : vector<9x256xf32>
    %cst_9 = arith.constant 0.000000e+00 : f32
    %9 = vector.broadcast %cst_9 : f32 to vector<9x256xf32>
    %10 = arith.maximumf %8, %9 : vector<9x256xf32>
    %c0_10 = arith.constant 0 : index
    %c0_11 = arith.constant 0 : index
    %c0_12 = arith.constant 0 : index
    %c0_13 = arith.constant 0 : index
    %11 = vector.load %arg5[%c0_10, %c0_11, %c0_12, %c0_13] : memref<1x1x9x256xf32, #tpu.memory_space<vmem>>, vector<1x1x9x256xf32>
    %12 = vector.shape_cast %11 : vector<1x1x9x256xf32> to vector<9x256xf32>
    %13 = vector.shape_cast %10 : vector<9x256xf32> to vector<1x1x9x256xf32>
    tpu.vector_store %arg5[%c0_10, %c0_11, %c0_12, %c0_13], %13 {strides = array<i32>} : memref<1x1x9x256xf32, #tpu.memory_space<vmem>>, vector<1x1x9x256xf32>,
    return
  }
  func.func @transform_0(%arg0: i32, %arg1: i32) -> (i32, i32, i32, i32) {
    %c0_i32 = arith.constant 0 : i32
    %c0_i32_0 = arith.constant 0 : i32
    %c0_i32_1 = arith.constant 0 : i32
    return %arg0, %arg1, %c0_i32, %c0_i32_0 : i32, i32, i32, i32
  }
  func.func @transform_1(%arg0: i32, %arg1: i32) -> (i32, i32, i32) {
    %c0_i32 = arith.constant 0 : i32
    %c0_i32_0 = arith.constant 0 : i32
    %c0_i32_1 = arith.constant 0 : i32
    return %arg1, %c0_i32, %c0_i32_0 : i32, i32, i32
  }
  func.func @transform_2(%arg0: i32, %arg1: i32) -> (i32, i32, i32) {
    %c0_i32 = arith.constant 0 : i32
    %c0_i32_0 = arith.constant 0 : i32
    %c0_i32_1 = arith.constant 0 : i32
    return %arg1, %c0_i32, %c0_i32_0 : i32, i32, i32
  }
  func.func @transform_3(%arg0: i32, %arg1: i32) -> (i32, i32, i32, i32) {
    %c0_i32 = arith.constant 0 : i32
    %c0_i32_0 = arith.constant 0 : i32
    %c0_i32_1 = arith.constant 0 : i32
    return %arg0, %arg1, %c0_i32, %c0_i32_0 : i32, i32, i32, i32
  }
}

</mosaic_0001>

<llo_original>
// kernel: tpu_custom_call.1
$region0: #{tpu_custom_call.1}
  #allocation0 [shape = 'u32[]', space=smem, size = 0x4, offset = 0x4, fixed_abs, tag = 'smem constant byte address 0x4 - core index']
  #allocation1 [shape = 'u32[72,128]{1,0:T(1,128)}', space=vmem, size = 0x9000, scoped, tag = 'internal scratch']
  %s0 = inlined_call_operand.vmem [shape: f32[2,4,9,256], index: 0, kind: input, shape index: {}]
  %s1 = inlined_call_operand.vmem [shape: f32[4,9,9], index: 1, kind: input, shape index: {}]
  %s2 = inlined_call_operand.vmem [shape: f32[4,9,1], index: 2, kind: input, shape index: {}]
  %s3 = inlined_call_operand.vmem [shape: f32[2,4,9,256], index: 3, kind: output, shape index: {}]
  %s4 = sld [smem:[#allocation0]]
  $region45: #{tpu_custom_call.1} parent=0
    _
  %s6 = ssub.s32 1, %s4
  %s7 = scalar_select 0, %s6, %s4
  loop: start=0, step=1, limit=10
  $region2: #{tpu_custom_call.1} parent=0 // loop_pre_header
    _
  $region3: #{tpu_custom_call.1} parent=0 // loop_header
    %s9 = sphi 0, %s13
    %p10 = scmp.ge.s32.totalorder %s9, 10
    %s16 = sphi 0, %s28
    %s17 = sphi 0, %s24
    %s18 = sphi 0, %s16
    %s19 = sphi 0, %s17
    %s20 = sphi 0, %s18
    %s21 = sphi 0, %s19
    %s33 = sphi 0, %s35
    %s36 = sphi 0, %s33
    %s37 = sphi 0, %s36
    %s53 = sphi 0, %s37
    %s59 = sphi 0, %s61
    %s62 = sphi 0, %s59
    %s63 = sphi 0, %s62
    %s79 = sphi 0, %s63
    %s85 = sphi 0, %s87
    %s88 = sphi 0, %s85
    %s89 = sphi 0, %s88
    %s105 = sphi 0, %s89
    %s113 = sphi 0, %s115
    %s116 = sphi 0, %s113
    %s117 = sphi 0, %s116
    %s133 = sphi 0, %s117
  $region4: #{tpu_custom_call.1} parent=0 // loop_header_branch
    %12 = sbr.rel (%p10) target = $region8
  $region5: #{tpu_custom_call.1} parent=0 // loop_body
    %s14 = ssub.s32 %s9, 1
    %s15 = ssub.s32 %s9, 2
    %s22 = sadd.s32 1, %s17
    %p23 = scmp.ge.s32.totalorder %s22, 4
    %s24 = scalar_select %p23, 0, %s22
    %s25 = sadd.s32 1, %s16
    %s26 = scalar_select %p23, %s25, %s16
    %p27 = scmp.ge.s32.totalorder %s26, 2
    %s28 = scalar_select %p27, 0, %s26
    %s29 = ssub.s32 %s16, %s28
    %s30 = ssub.s32 %s17, %s24
    %s31 = sor.u32 %s29, %s30
    %p32 = scmp.eq.s32.totalorder %s31, 0
    %s34 = sadd.s32 %s33, 1
    %s35 = scalar_select %p32, %s33, %s34
    %p38 = pneg %p32
    %p39 = scmp.eq.s32.totalorder %s9, 7
    %p40 = por %p38, %p39
    %p41 = scmp.ne.s32.totalorder %s33, %s36
    %p42 = scmp.eq.s32.totalorder %s9, 0
    %p43 = por %p41, %p42
    %p44 = scmp.ne.s32.totalorder %s33, %s36
    %p45 = scmp.eq.s32.totalorder %s14, 7
    %p46 = por %p44, %p45
    %p47 = scmp.ne.s32.totalorder %s36, %s37
    %p48 = scmp.eq.s32.totalorder %s14, 0
    %p49 = por %p47, %p48
    %p50 = scmp.ne.s32.totalorder %s36, %s37
    %p51 = scmp.eq.s32.totalorder %s15, 7
    %p52 = por %p50, %p51
    %p54 = scmp.ne.s32.totalorder %s37, %s53
    %p55 = scmp.eq.s32.totalorder %s15, 0
    %p56 = por %p54, %p55
    %s57 = ssub.s32 %s17, %s24
    %p58 = scmp.eq.s32.totalorder %s57, 0
    %s60 = sadd.s32 %s59, 1
    %s61 = scalar_select %p58, %s59, %s60
    %p64 = pneg %p58
    %p65 = scmp.eq.s32.totalorder %s9, 7
    %p66 = por %p64, %p65
    %p67 = scmp.ne.s32.totalorder %s59, %s62
    %p68 = scmp.eq.s32.totalorder %s9, 0
    %p69 = por %p67, %p68
    %p70 = scmp.ne.s32.totalorder %s59, %s62
    %p71 = scmp.eq.s32.totalorder %s14, 7
    %p72 = por %p70, %p71
    %p73 = scmp.ne.s32.totalorder %s62, %s63
    %p74 = scmp.eq.s32.totalorder %s14, 0
    %p75 = por %p73, %p74
    %p76 = scmp.ne.s32.totalorder %s62, %s63
    %p77 = scmp.eq.s32.totalorder %s15, 7
    %p78 = por %p76, %p77
    %p80 = scmp.ne.s32.totalorder %s63, %s79
    %p81 = scmp.eq.s32.totalorder %s15, 0
    %p82 = por %p80, %p81
    %s83 = ssub.s32 %s17, %s24
    %p84 = scmp.eq.s32.totalorder %s83, 0
    %s86 = sadd.s32 %s85, 1
    %s87 = scalar_select %p84, %s85, %s86
    %p90 = pneg %p84
    %p91 = scmp.eq.s32.totalorder %s9, 7
    %p92 = por %p90, %p91
    %p93 = scmp.ne.s32.totalorder %s85, %s88
    %p94 = scmp.eq.s32.totalorder %s9, 0
    %p95 = por %p93, %p94
    %p96 = scmp.ne.s32.totalorder %s85, %s88
    %p97 = scmp.eq.s32.totalorder %s14, 7
    %p98 = por %p96, %p97
    %p99 = scmp.ne.s32.totalorder %s88, %s89
    %p100 = scmp.eq.s32.totalorder %s14, 0
    %p101 = por %p99, %p100
    %p102 = scmp.ne.s32.totalorder %s88, %s89
    %p103 = scmp.eq.s32.totalorder %s15, 7
    %p104 = por %p102, %p103
    %p106 = scmp.ne.s32.totalorder %s89, %s105
    %p107 = scmp.eq.s32.totalorder %s15, 0
    %p108 = por %p106, %p107
    %s109 = ssub.s32 %s16, %s28
    %s110 = ssub.s32 %s17, %s24
    %s111 = sor.u32 %s109, %s110
    %p112 = scmp.eq.s32.totalorder %s111, 0
    %s114 = sadd.s32 %s113, 1
    %s115 = scalar_select %p112, %s113, %s114
    %p118 = pneg %p112
    %p119 = scmp.eq.s32.totalorder %s9, 7
    %p120 = por %p118, %p119
    %p121 = scmp.ne.s32.totalorder %s113, %s116
    %p122 = scmp.eq.s32.totalorder %s9, 0
    %p123 = por %p121, %p122
    %p124 = scmp.ne.s32.totalorder %s113, %s116
    %p125 = scmp.eq.s32.totalorder %s14, 7
    %p126 = por %p124, %p125
    %p127 = scmp.ne.s32.totalorder %s116, %s117
    %p128 = scmp.eq.s32.totalorder %s14, 0
    %p129 = por %p127, %p128
    %p130 = scmp.ne.s32.totalorder %s116, %s117
    %p131 = scmp.eq.s32.totalorder %s15, 7
    %p132 = por %p130, %p131
    %p134 = scmp.ne.s32.totalorder %s117, %s133
    %p135 = scmp.eq.s32.totalorder %s15, 0
    %p136 = por %p134, %p135
    %p137 = scmp.le.s32.totalorder 1, %s9
    %p138 = scmp.lt.s32.totalorder %s9, 9
    %p139 = pnand %p137, %p138
    %p140 = pneg %p139
    // Predicated region
    $region9: #{tpu_custom_call.1} parent=5 // pred_check
      _
    $region10: #{tpu_custom_call.1} parent=5 // pred_check_branch
      %142 = sbr.rel (%p139) target = $region12
    $region11: #{tpu_custom_call.1} parent=5 // pred_region
      %s143 = ssub.s32 %s9, 1
    $region12: #{tpu_custom_call.1} parent=5 // pred_fallthru
      _
    %p144 = scmp.lt.s32.totalorder %s9, 8
    // Predicated region
    $region13: #{tpu_custom_call.1} parent=5 // pred_check
      %p145 = pneg %p144
    $region14: #{tpu_custom_call.1} parent=5 // pred_check_branch
      %147 = sbr.rel (%p145) target = $region16
    $region15: #{tpu_custom_call.1} parent=5 // pred_region
      // Predicated region
      $region17: #{tpu_custom_call.1} parent=15 // pred_check
        %p148 = pneg %p43
      $region18: #{tpu_custom_call.1} parent=15 // pred_check_branch
        %150 = sbr.rel (%p148) target = $region20
      $region19: #{tpu_custom_call.1} parent=15 // pred_region
        %p151 = scmp.lt.s32.totalorder %s16, 1
        %s152 = scalar_select %p151, %s16, 1
        %p153 = scmp.lt.s32.totalorder %s17, 3
        %s154 = scalar_select %p153, %s17, 3
        %s155 = smul.addr %s154, 4
        %s156 = smul.addr %s152, 16
        %s157 = sadd.s32 %s155, %s156
        %s158 = smul.addr %s157, 8
        %s159 = scalar_lea.vmem %s0, %s158
      $region20: #{tpu_custom_call.1} parent=15 // pred_fallthru
        _
      // Predicated region
      $region21: #{tpu_custom_call.1} parent=15 // pred_check
        %p160 = pneg %p69
      $region22: #{tpu_custom_call.1} parent=15 // pred_check_branch
        %162 = sbr.rel (%p160) target = $region24
      $region23: #{tpu_custom_call.1} parent=15 // pred_region
        %p163 = scmp.lt.s32.totalorder %s17, 3
        %s164 = scalar_select %p163, %s17, 3
        %s165 = smul.addr %s164, 2
        %s166 = smul.addr %s165, 8
        %s167 = scalar_lea.vmem %s1, %s166
      $region24: #{tpu_custom_call.1} parent=15 // pred_fallthru
        _
      // Predicated region
      $region25: #{tpu_custom_call.1} parent=15 // pred_check
        %p168 = pneg %p95
      $region26: #{tpu_custom_call.1} parent=15 // pred_check_branch
        %170 = sbr.rel (%p168) target = $region28
      $region27: #{tpu_custom_call.1} parent=15 // pred_region
        %p171 = scmp.lt.s32.totalorder %s17, 3
        %s172 = scalar_select %p171, %s17, 3
        %s173 = smul.addr %s172, 2
        %s174 = smul.addr %s173, 8
        %s175 = scalar_lea.vmem %s2, %s174
      $region28: #{tpu_custom_call.1} parent=15 // pred_fallthru
        _
    $region16: #{tpu_custom_call.1} parent=5 // pred_fallthru
      _
    %p176 = scmp.le.s32.totalorder 1, %s9
    %p177 = scmp.lt.s32.totalorder %s9, 9
    %p178 = pnand %p176, %p177
    %p179 = pneg %p178
    // Predicated region
    $region29: #{tpu_custom_call.1} parent=5 // pred_check
      _
    $region30: #{tpu_custom_call.1} parent=5 // pred_check_branch
      %181 = sbr.rel (%p178) target = $region32
    $region31: #{tpu_custom_call.1} parent=5 // pred_region
      %s182 = ssub.s32 %s9, 1
      %p183 = scmp.lt.s32.totalorder %s18, 1
      %s184 = scalar_select %p183, %s18, 1
      %p185 = scmp.lt.s32.totalorder %s19, 3
      %s186 = scalar_select %p185, %s19, 3
      %s187 = smul.addr %s186, 4
      %s188 = smul.addr %s184, 16
      %s189 = sadd.s32 %s187, %s188
      %s190 = smul.addr %s189, 8
      %s191 = scalar_lea.vmem %s0, %s190
      %p192 = pneg %p49
      %p193 = pneg %p46
      %p194 = scmp.lt.s32.totalorder %s19, 3
      %s195 = scalar_select %p194, %s19, 3
      %s196 = smul.addr %s195, 2
      %s197 = smul.addr %s196, 8
      %s198 = scalar_lea.vmem %s1, %s197
      %p199 = pneg %p75
      %p200 = pneg %p72
      %p201 = scmp.lt.s32.totalorder %s19, 3
      %s202 = scalar_select %p201, %s19, 3
      %s203 = smul.addr %s202, 2
      %s204 = smul.addr %s203, 8
      %s205 = scalar_lea.vmem %s2, %s204
      %p206 = pneg %p101
      %p207 = pneg %p98
      %p208 = pneg %p129
      %p209 = pneg %p126
      %p210 = scmp.lt.s32.totalorder %s18, 1
      %s211 = scalar_select %p210, %s18, 1
      %p212 = scmp.lt.s32.totalorder %s19, 3
      %s213 = scalar_select %p212, %s19, 3
      %s214 = smul.addr %s213, 4
      %s215 = smul.addr %s211, 16
      %s216 = sadd.s32 %s214, %s215
      %s217 = smul.addr %s216, 8
      %s218 = scalar_lea.vmem %s3, %s217
      %p219 = scmp.lt.s32.totalorder %s18, 1
      %s220 = scalar_select %p219, %s18, 1
      %p221 = scmp.lt.s32.totalorder %s19, 3
      %s222 = scalar_select %p221, %s19, 3
      %s223 = smul.addr %s222, 4
      %s224 = smul.addr %s220, 16
      %s225 = sadd.s32 %s223, %s224
      %s226 = smul.addr %s225, 8
      %s227 = scalar_lea.vmem %s0, %s226
      %p228 = scmp.lt.s32.totalorder %s19, 3
      %s229 = scalar_select %p228, %s19, 3
      %s230 = smul.addr %s229, 2
      %s231 = smul.addr %s230, 8
      %s232 = scalar_lea.vmem %s1, %s231
      %p233 = scmp.lt.s32.totalorder %s19, 3
      %s234 = scalar_select %p233, %s19, 3
      %s235 = smul.addr %s234, 2
      %s236 = smul.addr %s235, 8
      %s237 = scalar_lea.vmem %s2, %s236
      %p238 = scmp.lt.s32.totalorder %s18, 1
      %s239 = scalar_select %p238, %s18, 1
      %p240 = scmp.lt.s32.totalorder %s19, 3
      %s241 = scalar_select %p240, %s19, 3
      %s242 = smul.addr %s241, 4
      %s243 = smul.addr %s239, 16
      %s244 = sadd.s32 %s242, %s243
      %s245 = smul.addr %s244, 8
      %s246 = scalar_lea.vmem %s3, %s245
      %v247 = vld [vmem:[%s232] sm:$0xff]
      %v248 = vld [vmem:[%s232 + $0x8] sm:$0x1]
      %v249 = vld [vmem:[%s227] sm:$0xff]
      %v250 = vld [vmem:[%s227 + $0x8] sm:$0xff]
      %v251 = vld [vmem:[%s227 + $0x10] sm:$0x1]
      %v252 = vld [vmem:[%s227 + $0x18] sm:$0x1]
      %v253 = vld [vmem:[%s237] sm:$0xff]
      %v254 = vld [vmem:[%s237 + $0x8] sm:$0x1]
      %256 = vset.pattern.permute.xlu0 0
      %257 = vperm.xlu0 %256, %v253
      %v258 = vpop.permute.xlu0 %257
      %261 = vset.pattern.permute.xlu0 0
      %262 = vperm.xlu0 %261, %v254
      %v263 = vpop.permute.xlu0 %262
      %vm265 = vcmask 72704
      %v267 = vsel %vm265, %v247, 0
      %v270 = vsel %vm265, %v248, 0
      %vm272 = vcmask 1040384
      %v274 = vsel %vm272, %v251, 0
      %v277 = vsel %vm272, %v252, 0
      %279 = vmatpush.msra.mxu0 0.0
      %280 = vmatpush.msra.mxu0 0.0
      %281 = vmatpush.msra.mxu0 0.0
      %282 = vmatpush.msra.mxu0 0.0
      %283 = vmatpush.msra.mxu0 0.0
      %284 = vmatpush.msra.mxu0 0.0
      %285 = vmatpush.msra.mxu0 0.0
      %286 = vmatpush.msra.mxu0 0.0
      %287 = vmatpush.msra.mxu0 0.0
      %288 = vmatpush.msra.mxu0 0.0
      %289 = vmatpush.msra.mxu0 0.0
      %290 = vmatpush.msra.mxu0 0.0
      %291 = vmatpush.msra.mxu0 0.0
      %292 = vmatpush.msra.mxu0 0.0
      %293 = vmatpush.msra.mxu0 %v274
      %294 = vmatpush.msra.mxu0 %v249
      %295 = vmatmul.f32.gmra.mxu0 %v267
      %v296 = vpop.f32.mrf.mxu0
      %v297 = vadd.f32 %v258, %v296
      %298 = vmatmul.f32.gmra.mxu0 %v270
      %v299 = vpop.f32.mrf.mxu0
      %v300 = vadd.f32 %v263, %v299
      %301 = vdwg.mxu0
      %302 = vmatpush.msra.mxu0 0.0
      %303 = vmatpush.msra.mxu0 0.0
      %304 = vmatpush.msra.mxu0 0.0
      %305 = vmatpush.msra.mxu0 0.0
      %306 = vmatpush.msra.mxu0 0.0
      %307 = vmatpush.msra.mxu0 0.0
      %308 = vmatpush.msra.mxu0 0.0
      %309 = vmatpush.msra.mxu0 0.0
      %310 = vmatpush.msra.mxu0 0.0
      %311 = vmatpush.msra.mxu0 0.0
      %312 = vmatpush.msra.mxu0 0.0
      %313 = vmatpush.msra.mxu0 0.0
      %314 = vmatpush.msra.mxu0 0.0
      %315 = vmatpush.msra.mxu0 0.0
      %316 = vmatpush.msra.mxu0 %v277
      %317 = vmatpush.msra.mxu0 %v250
      %318 = vmatmul.f32.gmra.mxu0 %v267
      %v319 = vpop.f32.mrf.mxu0
      %v320 = vadd.f32 %v258, %v319
      %321 = vmatmul.f32.gmra.mxu0 %v270
      %v322 = vpop.f32.mrf.mxu0
      %v323 = vadd.f32 %v263, %v322
      %324 = vdwg.mxu0
      %v325 = vmax.f32 %v297, 0.0
      %v326 = vmax.f32 %v320, 0.0
      %v327 = vmax.f32 %v300, 0.0
      %v328 = vmax.f32 %v323, 0.0
      %329 = vst [vmem:[%s246] sm:$0xff] %v325
      %330 = vst [vmem:[%s246 + $0x8] sm:$0xff] %v326
      %331 = vst [vmem:[%s246 + $0x10] sm:$0x1] %v327
      %332 = vst [vmem:[%s246 + $0x18] sm:$0x1] %v328
      %p333 = scmp.lt.s32.totalorder %s18, 1
      %s334 = scalar_select %p333, %s18, 1
      %p335 = scmp.lt.s32.totalorder %s19, 3
      %s336 = scalar_select %p335, %s19, 3
      %s337 = smul.addr %s336, 4
      %s338 = smul.addr %s334, 16
      %s339 = sadd.s32 %s337, %s338
      %s340 = smul.addr %s339, 8
      %s341 = scalar_lea.vmem %s3, %s340
      // Predicated region
      $region33: #{tpu_custom_call.1} parent=31 // pred_check
        %p342 = pneg %p126
      $region34: #{tpu_custom_call.1} parent=31 // pred_check_branch
        %344 = sbr.rel (%p342) target = $region36
      $region35: #{tpu_custom_call.1} parent=31 // pred_region
        _
      $region36: #{tpu_custom_call.1} parent=31 // pred_fallthru
        _
    $region32: #{tpu_custom_call.1} parent=5 // pred_fallthru
      _
    %p345 = scmp.le.s32.totalorder 2, %s9
    // Predicated region
    $region37: #{tpu_custom_call.1} parent=5 // pred_check
      %p346 = pneg %p345
    $region38: #{tpu_custom_call.1} parent=5 // pred_check_branch
      %348 = sbr.rel (%p346) target = $region40
    $region39: #{tpu_custom_call.1} parent=5 // pred_region
      %s349 = ssub.s32 %s9, 2
      // Predicated region
      $region41: #{tpu_custom_call.1} parent=39 // pred_check
        %p350 = pneg %p132
      $region42: #{tpu_custom_call.1} parent=39 // pred_check_branch
        %352 = sbr.rel (%p350) target = $region44
      $region43: #{tpu_custom_call.1} parent=39 // pred_region
        %p353 = scmp.lt.s32.totalorder %s20, 1
        %s354 = scalar_select %p353, %s20, 1
        %p355 = scmp.lt.s32.totalorder %s21, 3
        %s356 = scalar_select %p355, %s21, 3
        %s357 = smul.addr %s356, 4
        %s358 = smul.addr %s354, 16
        %s359 = sadd.s32 %s357, %s358
        %s360 = smul.addr %s359, 8
        %s361 = scalar_lea.vmem %s3, %s360
      $region44: #{tpu_custom_call.1} parent=39 // pred_fallthru
        _
    $region40: #{tpu_custom_call.1} parent=5 // pred_fallthru
      _
  $region6: #{tpu_custom_call.1} parent=0 // loop_footer
    %s13 = sadd.s32 1, %s9
  $region7: #{tpu_custom_call.1} parent=0 // loop_footer_branch
    %8 = sbr.rel target = $region3
  $region8: #{tpu_custom_call.1} parent=0 // loop_exit
    _

</llo_original>
